<compile_context>
chip_gen: v5e
topology: v5e:2x2
jax: 0.10.0
libtpu: 0.0.40
codegen_flags: <defaults>
</compile_context>

<pallas_src>
import functools

import jax
import jax.numpy as jnp
from jax.experimental import pallas as pl
from jax.experimental.pallas import tpu as pltpu


_FUSED_MAX_BC = 512     # above this B*C, fall back to index kernel + XLA gather


def _round_up(x, m):
    return (x + m - 1) // m * m


def _tile_params():
    """(TM, TN, vmem_limit_bytes) scaled per TPU generation."""
    vmem_bytes = None
    try:
        vmem_bytes = int(pltpu.get_tpu_info().vmem_capacity_bytes)
    except Exception:
        vmem_bytes = None
    if vmem_bytes is None:
        try:
            kind = jax.devices()[0].device_kind.lower()
            vmem_bytes = (64 << 20) if "v7" in kind else (128 << 20)
        except Exception:
            vmem_bytes = 64 << 20
    if vmem_bytes >= (100 << 20):
        # v5e / v6e: 128 MiB VMEM -> bigger M tile, bigger scoped limit.
        return 1024, 512, 64 << 20
    # v7x: 64 MiB physical VMEM -> conservative.
    return 512, 512, 32 << 20


def _m_axis_semantics():
    """Use CORE_PARALLEL on v7x (2 TCs/chip) so M-tiles are split across both cores."""
    try:
        kind = jax.devices()[0].device_kind.lower()
        if "v7" in kind:
            return pltpu.CORE_PARALLEL
    except Exception:
        pass
    return pltpu.PARALLEL


def _chunk_min_argmin(nx, ny, cx, cy, lane, big_idx):
    """nx, ny: (TM, 1) shifted queries; cx, cy: (1, TN) target chunk; lane: (1, TN) global ids.
    Returns (chunk_min (TM,1) f32, chunk_idx (TM,1) i32) with first-index tie-breaking."""
    dx = nx - cx                                  # (TM, TN)   VPU
    dy = ny - cy
    d2 = dx * dx + dy * dy                        # direct form: numerically robust
    chunk_min = jnp.min(d2, axis=1, keepdims=True)                       # (TM, 1)  XLU
    chunk_idx = jnp.min(jnp.where(d2 <= chunk_min, lane, big_idx),
                        axis=1, keepdims=True)                           # first-index argmin
    return chunk_min, chunk_idx


def _argmin_chunk_kernel(nx_ref, ny_ref, cx_ref, cy_ref, lane_ref,
                         idx_ref, min_ref, *, big_idx):
    """Large-B*C path: running nearest-neighbor index over N chunks (index output only)."""
    j = pl.program_id(1)

    @pl.when(j == 0)
    def _():
        min_ref[...] = jnp.full_like(min_ref, jnp.inf)
        idx_ref[...] = jnp.zeros_like(idx_ref)

    chunk_min, chunk_idx = _chunk_min_argmin(
        nx_ref[...], ny_ref[...], cx_ref[...], cy_ref[...], lane_ref[...], big_idx)
    improved = chunk_min < min_ref[...]           # strict '<' keeps first-index across chunks
    min_ref[...] = jnp.where(improved, chunk_min, min_ref[...])
    idx_ref[...] = jnp.where(improved, chunk_idx, idx_ref[...]).astype(jnp.int32)


def _fused_chunk_kernel(nx_ref, ny_ref, cx_ref, cy_ref, lane_ref, vals_ref,
                        out_ref, min_ref, *, big_idx):
    """Fused path: running argmin + one-hot MXU gather, lane-dense (TM, BC_pad) f32 output."""
    j = pl.program_id(1)

    @pl.when(j == 0)
    def _():
        min_ref[...] = jnp.full_like(min_ref, jnp.inf)
        out_ref[...] = jnp.zeros_like(out_ref)

    lane = lane_ref[...]
    chunk_min, chunk_idx = _chunk_min_argmin(
        nx_ref[...], ny_ref[...], cx_ref[...], cy_ref[...], lane, big_idx)
    onehot = (lane == chunk_idx).astype(vals_ref.dtype)                  # (TM, TN)
    gathered = jnp.dot(onehot, vals_ref[...],
                       preferred_element_type=jnp.float32)               # (TM, BC_pad)  MXU
    improved = chunk_min < min_ref[...]
    min_ref[...] = jnp.where(improved, chunk_min, min_ref[...])
    out_ref[...] = jnp.where(improved, gathered, out_ref[...])


def upsample_nearest_pallas(coords, values, *, scale=4, spacing=0.001, align_corners=False):
    assert scale == 4 and not align_corners, "only grid scale=4, align_corners=False supported"
    N, D = coords.shape
    B, N2, C = values.shape
    assert N == N2 and D == 2

    coords = coords.astype(jnp.float32)
    s = jnp.float32(spacing)
    shift = jnp.float32(spacing / 2.0)

    c0, c1 = coords[:, 0], coords[:, 1]
    new_coords = jnp.concatenate(
        [jnp.stack([c0, c1 + s], axis=1),
         jnp.stack([c0 + s, c1], axis=1),
         jnp.stack([c0 + s, c1 + s], axis=1)], axis=0)                   # (3N, 2)
    M = new_coords.shape[0]

    tm_def, tn_def, vmem_limit = _tile_params()
    tn = min(tn_def, _round_up(N, 128))
    n_pad = _round_up(N, tn)
    tm = min(tm_def, _round_up(M, 8))
    m_pad = _round_up(M, tm)
    grid = (m_pad // tm, n_pad // tn)

    # Lane-dense target coords (1, N_pad); padded targets pushed far away so they never win.
    big = jnp.float32(1e9)
    cx = jnp.full((1, n_pad), big, jnp.float32).at[0, :N].set(coords[:, 0])
    cy = jnp.full((1, n_pad), big, jnp.float32).at[0, :N].set(coords[:, 1])
    # Resident global lane ids (doubles as the argmin index, no per-step iota).
    lane_ids = jax.lax.broadcasted_iota(jnp.int32, (1, n_pad), 1)

    # Shifted query components as (M_pad, 1) sublane columns (broadcast-ready vs (1, TN)).
    nx = jnp.zeros((m_pad, 1), jnp.float32).at[:M, 0].set(new_coords[:, 0] - shift)
    ny = jnp.zeros((m_pad, 1), jnp.float32).at[:M, 0].set(new_coords[:, 1] - shift)

    cparams = pltpu.CompilerParams(
        dimension_semantics=(_m_axis_semantics(), pltpu.ARBITRARY),
        vmem_limit_bytes=vmem_limit)

    common_in_specs = [
        pl.BlockSpec((tm, 1), lambda i, j: (i, 0)),      # nx
        pl.BlockSpec((tm, 1), lambda i, j: (i, 0)),      # ny
        pl.BlockSpec((1, tn), lambda i, j: (0, j)),      # cx chunk
        pl.BlockSpec((1, tn), lambda i, j: (0, j)),      # cy chunk
        pl.BlockSpec((1, tn), lambda i, j: (0, j)),      # lane ids chunk
    ]

    bc = B * C
    if bc <= _FUSED_MAX_BC:
        # ---- fused path (any N): running argmin + per-chunk one-hot MXU gather ----
        bc_pad = _round_up(bc, 128)
        gdtype = jnp.bfloat16 if values.dtype == jnp.bfloat16 else jnp.float32
        vals2d = jnp.transpose(values, (1, 0, 2)).reshape(N, bc).astype(gdtype)
        vals2d = jnp.zeros((n_pad, bc_pad), gdtype).at[:N, :bc].set(vals2d)
        out2d = pl.pallas_call(
            functools.partial(_fused_chunk_kernel, big_idx=n_pad),
            out_shape=jax.ShapeDtypeStruct((m_pad, bc_pad), jnp.float32),
            grid=grid,
            in_specs=common_in_specs + [pl.BlockSpec((tn, bc_pad), lambda i, j: (j, 0))],
            out_specs=pl.BlockSpec((tm, bc_pad), lambda i, j: (i, 0)),
            scratch_shapes=[pltpu.VMEM((tm, 1), jnp.float32)],
            compiler_params=cparams,
        )(nx, ny, cx, cy, lane_ids, vals2d)
        new_values = jnp.transpose(out2d[:M, :bc].reshape(M, B, C),
                                   (1, 0, 2)).astype(values.dtype)       # (B, 3N, C)
    else:
        # ---- large-B*C path: chunked argmin kernel + XLA gather on native (B, N, C) layout ----
        idx = pl.pallas_call(
            functools.partial(_argmin_chunk_kernel, big_idx=n_pad),
            out_shape=jax.ShapeDtypeStruct((m_pad, 1), jnp.int32),
            grid=grid,
            in_specs=common_in_specs,
            out_specs=pl.BlockSpec((tm, 1), lambda i, j: (i, 0)),
            scratch_shapes=[pltpu.VMEM((tm, 1), jnp.float32)],
            compiler_params=cparams,
        )(nx, ny, cx, cy, lane_ids)
        new_values = jnp.take(values, idx[:M, 0], axis=1)                # (B, 3N, C)

    out_coords = jnp.concatenate([coords, new_coords], axis=0)           # (4N, 2)
    out_values = jnp.concatenate([values, new_values], axis=1)           # (B, 4N, C)
    return out_coords, out_values


class Upsample:
    """JAX/Pallas port of dinet.inn.layers.upsample.Upsample (nearest mode, grid coords)."""

    def __init__(self, scale, spacing=0.001, mode="nearest", align_corners=False):
        self.scale = scale
        self.spacing = spacing
        self.mode = mode
        self.align_corners = align_corners
        self.shift = spacing / 2

    def __call__(self, coords, values):
        if self.mode == "nearest":
            return upsample_nearest_pallas(coords, values, scale=self.scale,
                                           spacing=self.spacing,
                                           align_corners=self.align_corners)
        # TODO(synk): 'k-NN' (top-k mean) and 'bilinear' (ragged mask split/mean) modes not ported.
        raise NotImplementedError(self.mode)


if __name__ == "__main__":
    key = jax.random.PRNGKey(0)
    k1, k2, k3 = jax.random.split(key, 3)

    def grid_coords(H, W):
        xs = jnp.linspace(-1.0, 1.0, W, dtype=jnp.float32)
        ys = jnp.linspace(-1.0, 1.0, H, dtype=jnp.float32)
        gx, gy = jnp.meshgrid(xs, ys, indexing="ij")
        return jnp.stack([gx.reshape(-1), gy.reshape(-1)], axis=1)

    def reference(coords, values, s=0.001):
        shift = s / 2.0
        c0, c1 = coords[:, 0], coords[:, 1]
        new_coords = jnp.concatenate(
            [jnp.stack([c0, c1 + s], axis=1),
             jnp.stack([c0 + s, c1], axis=1),
             jnp.stack([c0 + s, c1 + s], axis=1)], axis=0)
        d = jnp.linalg.norm((new_coords - shift)[:, None, :] - coords[None, :, :], axis=-1)
        idx = jnp.argmin(d, axis=1)
        return (jnp.concatenate([coords, new_coords], axis=0),
                jnp.concatenate([values, values[:, idx, :]], axis=1))

    layer = Upsample(scale=4, spacing=0.001, mode="nearest", align_corners=False)

    # Small case (fused one-hot MXU gather path): 4x4 grid, B=2, C=4.
    coords_s = grid_coords(4, 4)                                         # (16, 2)
    values_s = jax.random.normal(k1, (2, 16, 4), dtype=jnp.float32)      # (2, 16, 4)
    oc_s, ov_s = layer(coords_s, values_s)
    jax.block_until_ready(ov_s)
    rc_s, rv_s = reference(coords_s, values_s)
    assert oc_s.shape == (64, 2) and ov_s.shape == (2, 64, 4)
    assert jnp.allclose(oc_s, rc_s, atol=1e-6)
    assert jnp.allclose(ov_s, rv_s, atol=1e-5)

    # Larger case (multiple M-tiles and N-chunks, still fused): 40x40 grid.
    coords_l = grid_coords(40, 40)                                       # (1600, 2)
    values_l = jax.random.normal(k2, (2, 1600, 4), dtype=jnp.float32)    # (2, 1600, 4)
    oc_l, ov_l = layer(coords_l, values_l)
    jax.block_until_ready(ov_l)
    rc_l, rv_l = reference(coords_l, values_l)
    assert oc_l.shape == (6400, 2) and ov_l.shape == (2, 6400, 4)
    assert jnp.allclose(oc_l, rc_l, atol=1e-6)
    assert jnp.allclose(ov_l, rv_l, atol=1e-5)

    # Wide-channel case (exercises the chunked argmin kernel + XLA gather path): B*C > 512.
    coords_w = grid_coords(4, 4)                                         # (16, 2)
    values_w = jax.random.normal(k3, (2, 16, 384), dtype=jnp.float32)    # (2, 16, 384)
    oc_w, ov_w = layer(coords_w, values_w)
    jax.block_until_ready(ov_w)
    rc_w, rv_w = reference(coords_w, values_w)
    assert oc_w.shape == (64, 2) and ov_w.shape == (2, 64, 384)
    assert jnp.allclose(oc_w, rc_w, atol=1e-6)
    assert jnp.allclose(ov_w, rv_w, atol=1e-5)

    print("KERNEL_OK")
</pallas_src>

<mosaic_0001>
module attributes {stable_mosaic.version = 11 : i64} {
  func.func @_fused_chunk_kernel(%arg0: i32, %arg1: i32, %arg2: memref<48x1xf32, #tpu.memory_space<vmem>>, %arg3: memref<48x1xf32, #tpu.memory_space<vmem>>, %arg4: memref<1x128xf32, #tpu.memory_space<vmem>>, %arg5: memref<1x128xf32, #tpu.memory_space<vmem>>, %arg6: memref<1x128xi32, #tpu.memory_space<vmem>>, %arg7: memref<128x128xf32, #tpu.memory_space<vmem>>, %arg8: memref<48x128xf32, #tpu.memory_space<vmem>>, %arg9: memref<48x1xf32, #tpu.memory_space<vmem>>) attributes {dimension_semantics = [#tpu.dimension_semantics<parallel>, #tpu.dimension_semantics<arbitrary>], iteration_bounds = array<i64: 1, 1>, scalar_prefetch = 0 : i64, scratch_operands = 1 : i64, tpu.core_type = #tpu.core_type<tc>, window_params = [{transform_indices = @transform_0, window_bounds = array<i64: 48, 1>}, {transform_indices = @transform_1, window_bounds = array<i64: 48, 1>}, {transform_indices = @transform_2, window_bounds = array<i64: 1, 128>}, {transform_indices = @transform_3, window_bounds = array<i64: 1, 128>}, {transform_indices = @transform_4, window_bounds = array<i64: 1, 128>}, {transform_indices = @transform_5, window_bounds = array<i64: 128, 128>}, {transform_indices = @transform_6, window_bounds = array<i64: 48, 128>}]} {
    %c0_i32 = arith.constant 0 : i32
    %0 = arith.cmpi eq, %arg1, %c0_i32 : i32
    %1 = arith.extui %0 : i1 to i32
    %c0_i32_0 = arith.constant 0 : i32
    %2 = arith.cmpi ne, %1, %c0_i32_0 : i32
    scf.if %2 {
      %cst_24 = arith.constant 0x7F800000 : f32
      %44 = vector.broadcast %cst_24 : f32 to vector<48x1xf32>
      %c0_25 = arith.constant 0 : index
      %c0_26 = arith.constant 0 : index
      %45 = vector.load %arg9[%c0_25, %c0_26] : memref<48x1xf32, #tpu.memory_space<vmem>>, vector<48x1xf32>
      tpu.vector_store %arg9[%c0_25, %c0_26], %44 {strides = array<i32>} : memref<48x1xf32, #tpu.memory_space<vmem>>, vector<48x1xf32>,
      %cst_27 = arith.constant 0.000000e+00 : f32
      %46 = vector.broadcast %cst_27 : f32 to vector<48x128xf32>
      %c0_28 = arith.constant 0 : index
      %c0_29 = arith.constant 0 : index
      %47 = vector.load %arg8[%c0_28, %c0_29] : memref<48x128xf32, #tpu.memory_space<vmem>>, vector<48x128xf32>
      tpu.vector_store %arg8[%c0_28, %c0_29], %46 {strides = array<i32>} : memref<48x128xf32, #tpu.memory_space<vmem>>, vector<48x128xf32>,
    } else {
    }
    %c0 = arith.constant 0 : index
    %c0_1 = arith.constant 0 : index
    %3 = vector.load %arg6[%c0, %c0_1] : memref<1x128xi32, #tpu.memory_space<vmem>>, vector<1x128xi32>
    %c0_2 = arith.constant 0 : index
    %c0_3 = arith.constant 0 : index
    %4 = vector.load %arg2[%c0_2, %c0_3] : memref<48x1xf32, #tpu.memory_space<vmem>>, vector<48x1xf32>
    %c0_4 = arith.constant 0 : index
    %c0_5 = arith.constant 0 : index
    %5 = vector.load %arg3[%c0_4, %c0_5] : memref<48x1xf32, #tpu.memory_space<vmem>>, vector<48x1xf32>
    %c0_6 = arith.constant 0 : index
    %c0_7 = arith.constant 0 : index
    %6 = vector.load %arg4[%c0_6, %c0_7] : memref<1x128xf32, #tpu.memory_space<vmem>>, vector<1x128xf32>
    %c0_8 = arith.constant 0 : index
    %c0_9 = arith.constant 0 : index
    %7 = vector.load %arg5[%c0_8, %c0_9] : memref<1x128xf32, #tpu.memory_space<vmem>>, vector<1x128xf32>
    %8 = vector.broadcast %4 : vector<48x1xf32> to vector<48x128xf32>
    %9 = vector.broadcast %6 : vector<1x128xf32> to vector<48x128xf32>
    %10 = arith.subf %8, %9 : vector<48x128xf32>
    %11 = vector.broadcast %5 : vector<48x1xf32> to vector<48x128xf32>
    %12 = vector.broadcast %7 : vector<1x128xf32> to vector<48x128xf32>
    %13 = arith.subf %11, %12 : vector<48x128xf32>
    %14 = arith.mulf %10, %10 : vector<48x128xf32>
    %15 = arith.mulf %13, %13 : vector<48x128xf32>
    %16 = arith.addf %14, %15 : vector<48x128xf32>
    %cst = arith.constant dense<0x7F800000> : vector<48xf32>
    %17 = vector.multi_reduction <minimumf>, %16, %cst [1] : vector<48x128xf32> to vector<48xf32>
    %18 = vector.shape_cast %17 : vector<48xf32> to vector<48x1xf32>
    %19 = vector.broadcast %18 : vector<48x1xf32> to vector<48x128xf32>
    %20 = arith.cmpf ole, %16, %19 : vector<48x128xf32>
    %c128_i32 = arith.constant 128 : i32
    %21 = vector.shape_cast %3 : vector<1x128xi32> to vector<1x128xi32>
    %22 = vector.broadcast %21 : vector<1x128xi32> to vector<48x128xi32>
    %23 = vector.broadcast %c128_i32 : i32 to vector<48x128xi32>
    %24 = arith.select %20, %22, %23 : vector<48x128xi1>, vector<48x128xi32>
    %cst_10 = arith.constant dense<2147483647> : vector<48xi32>
    %25 = vector.multi_reduction <minsi>, %24, %cst_10 [1] : vector<48x128xi32> to vector<48xi32>
    %26 = vector.shape_cast %25 : vector<48xi32> to vector<48x1xi32>
    %27 = vector.broadcast %3 : vector<1x128xi32> to vector<48x128xi32>
    %28 = vector.broadcast %26 : vector<48x1xi32> to vector<48x128xi32>
    %29 = arith.cmpi eq, %27, %28 : vector<48x128xi32>
    %30 = arith.extui %29 : vector<48x128xi1> to vector<48x128xi32>
    %31 = arith.sitofp %30 : vector<48x128xi32> to vector<48x128xf32>
    %c0_11 = arith.constant 0 : index
    %c0_12 = arith.constant 0 : index
    %32 = vector.load %arg7[%c0_11, %c0_12] : memref<128x128xf32, #tpu.memory_space<vmem>>, vector<128x128xf32>
    %cst_13 = arith.constant dense<0.000000e+00> : vector<48x128xf32>
    %33 = tpu.matmul %31, %32, %cst_13 {dimension_numbers = #tpu.dot_dimension_numbers<[1], [0], [0], [1], [0, 0, 1, 1], [], []>} : vector<48x128xf32>, vector<128x128xf32>, vector<48x128xf32> -> vector<48x128xf32>
    %c0_14 = arith.constant 0 : index
    %c0_15 = arith.constant 0 : index
    %34 = vector.load %arg9[%c0_14, %c0_15] : memref<48x1xf32, #tpu.memory_space<vmem>>, vector<48x1xf32>
    %35 = arith.cmpf olt, %18, %34 : vector<48x1xf32>
    %c0_16 = arith.constant 0 : index
    %c0_17 = arith.constant 0 : index
    %36 = vector.load %arg9[%c0_16, %c0_17] : memref<48x1xf32, #tpu.memory_space<vmem>>, vector<48x1xf32>
    %37 = arith.select %35, %18, %36 : vector<48x1xi1>, vector<48x1xf32>
    %c0_18 = arith.constant 0 : index
    %c0_19 = arith.constant 0 : index
    %38 = vector.load %arg9[%c0_18, %c0_19] : memref<48x1xf32, #tpu.memory_space<vmem>>, vector<48x1xf32>
    tpu.vector_store %arg9[%c0_18, %c0_19], %37 {strides = array<i32>} : memref<48x1xf32, #tpu.memory_space<vmem>>, vector<48x1xf32>,
    %c0_20 = arith.constant 0 : index
    %c0_21 = arith.constant 0 : index
    %39 = vector.load %arg8[%c0_20, %c0_21] : memref<48x128xf32, #tpu.memory_space<vmem>>, vector<48x128xf32>
    %40 = vector.shape_cast %35 : vector<48x1xi1> to vector<48x1xi1>
    %41 = vector.broadcast %40 : vector<48x1xi1> to vector<48x128xi1>
    %42 = arith.select %41, %33, %39 : vector<48x128xi1>, vector<48x128xf32>
    %c0_22 = arith.constant 0 : index
    %c0_23 = arith.constant 0 : index
    %43 = vector.load %arg8[%c0_22, %c0_23] : memref<48x128xf32, #tpu.memory_space<vmem>>, vector<48x128xf32>
    tpu.vector_store %arg8[%c0_22, %c0_23], %42 {strides = array<i32>} : memref<48x128xf32, #tpu.memory_space<vmem>>, vector<48x128xf32>,
    return
  }
  func.func @transform_0(%arg0: i32, %arg1: i32) -> (i32, i32) {
    %c0_i32 = arith.constant 0 : i32
    %c0_i32_0 = arith.constant 0 : i32
    return %arg0, %c0_i32 : i32, i32
  }
  func.func @transform_1(%arg0: i32, %arg1: i32) -> (i32, i32) {
    %c0_i32 = arith.constant 0 : i32
    %c0_i32_0 = arith.constant 0 : i32
    return %arg0, %c0_i32 : i32, i32
  }
  func.func @transform_2(%arg0: i32, %arg1: i32) -> (i32, i32) {
    %c0_i32 = arith.constant 0 : i32
    %c0_i32_0 = arith.constant 0 : i32
    return %c0_i32, %arg1 : i32, i32
  }
  func.func @transform_3(%arg0: i32, %arg1: i32) -> (i32, i32) {
    %c0_i32 = arith.constant 0 : i32
    %c0_i32_0 = arith.constant 0 : i32
    return %c0_i32, %arg1 : i32, i32
  }
  func.func @transform_4(%arg0: i32, %arg1: i32) -> (i32, i32) {
    %c0_i32 = arith.constant 0 : i32
    %c0_i32_0 = arith.constant 0 : i32
    return %c0_i32, %arg1 : i32, i32
  }
  func.func @transform_5(%arg0: i32, %arg1: i32) -> (i32, i32) {
    %c0_i32 = arith.constant 0 : i32
    %c0_i32_0 = arith.constant 0 : i32
    return %arg1, %c0_i32 : i32, i32
  }
  func.func @transform_6(%arg0: i32, %arg1: i32) -> (i32, i32) {
    %c0_i32 = arith.constant 0 : i32
    %c0_i32_0 = arith.constant 0 : i32
    return %arg0, %c0_i32 : i32, i32
  }
}

</mosaic_0001>

<llo_original>
// kernel: tpu_custom_call.1
$region0: #{tpu_custom_call.1}
  #allocation0 [shape = 'u32[]', space=smem, size = 0x4, offset = 0x4, fixed_abs, tag = 'smem constant byte address 0x4 - core index']
  #allocation1 [shape = 'u32[72,128]{1,0:T(1,128)}', space=vmem, size = 0x9000, scoped, tag = 'internal scratch']
  #allocation2 [shape = 'f32[48,1]{1,0:T(8,128)}', space=vmem, size = 0x6000, scoped, tag = 'scratch operand']
  %s0 = inlined_call_operand.vmem [shape: f32[48,1], index: 0, kind: input, shape index: {}]
  %s1 = inlined_call_operand.vmem [shape: f32[48,1], index: 1, kind: input, shape index: {}]
  %s2 = inlined_call_operand.vmem [shape: f32[1,128], index: 2, kind: input, shape index: {}]
  %s3 = inlined_call_operand.vmem [shape: f32[1,128], index: 3, kind: input, shape index: {}]
  %s4 = inlined_call_operand.vmem [shape: s32[1,128], index: 4, kind: input, shape index: {}]
  %s5 = inlined_call_operand.hbm [shape: f32[128,128], index: 5, kind: input, shape index: {}]
  %s6 = inlined_call_operand.hbm [shape: f32[48,128], index: 6, kind: output, shape index: {}]
  %s7 = sld [smem:[#allocation0]]
  $region42: #{tpu_custom_call.1} parent=0
    _
  %s9 = ssub.s32 1, %s7
  %s10 = scalar_select 0, %s9, %s7
  $region1: #{tpu_custom_call.1} parent=0
    #allocation3 [shape = 'u8[65536]{0}', space=vmem, size = 0x10000, scoped, tag = 'input window, operand 5, single buffered']
    #allocation4 [shape = 's32[1]{0}', space=sflag, size = 0x4, scoped, tag = 'scoped memory for tpu_custom_call.1']
    #allocation5 [shape = 's32[1]{0}', space=sflag, size = 0x4, scoped, tag = 'scoped memory for tpu_custom_call.1']
    #allocation6 [shape = 'u8[24576]{0}', space=vmem, size = 0x6000, scoped, tag = 'output window, operand 0, single buffered']
    %11 = vsyncpa [#allocation4], 0
    %12 = vsyncpa [#allocation5], 0
    // Predicated region
    $region2: #{tpu_custom_call.1} parent=1 // pred_check
      _
    $region3: #{tpu_custom_call.1} parent=1 // pred_check_branch
      %14 = sbr.rel (0) target = $region5
    $region4: #{tpu_custom_call.1} parent=1 // pred_region
      _
    $region5: #{tpu_custom_call.1} parent=1 // pred_fallthru
      _
    // Predicated region
    $region6: #{tpu_custom_call.1} parent=1 // pred_check
      _
    $region7: #{tpu_custom_call.1} parent=1 // pred_check_branch
      %16 = sbr.rel (0) target = $region9
    $region8: #{tpu_custom_call.1} parent=1 // pred_region
      _
    $region9: #{tpu_custom_call.1} parent=1 // pred_fallthru
      _
    // Predicated region
    $region10: #{tpu_custom_call.1} parent=1 // pred_check
      _
    $region11: #{tpu_custom_call.1} parent=1 // pred_check_branch
      %18 = sbr.rel (0) target = $region13
    $region12: #{tpu_custom_call.1} parent=1 // pred_region
      _
    $region13: #{tpu_custom_call.1} parent=1 // pred_fallthru
      _
    // Predicated region
    $region14: #{tpu_custom_call.1} parent=1 // pred_check
      _
    $region15: #{tpu_custom_call.1} parent=1 // pred_check_branch
      %20 = sbr.rel (0) target = $region17
    $region16: #{tpu_custom_call.1} parent=1 // pred_region
      _
    $region17: #{tpu_custom_call.1} parent=1 // pred_fallthru
      _
    // Predicated region
    $region18: #{tpu_custom_call.1} parent=1 // pred_check
      _
    $region19: #{tpu_custom_call.1} parent=1 // pred_check_branch
      %22 = sbr.rel (0) target = $region21
    $region20: #{tpu_custom_call.1} parent=1 // pred_region
      _
    $region21: #{tpu_custom_call.1} parent=1 // pred_fallthru
      _
    // Predicated region
    $region22: #{tpu_custom_call.1} parent=1 // pred_check
      _
    $region23: #{tpu_custom_call.1} parent=1 // pred_check_branch
      %24 = sbr.rel (0) target = $region25
    $region24: #{tpu_custom_call.1} parent=1 // pred_region
      %26 = vsyncadd [#allocation4], 0
      %s27 = sshll.u32 %s5, 4
      %s28 = int_to_ptr.hbm [resolvable:$true] %s27
      %s29 = sshll.u32 [#allocation3], 4
      %s30 = int_to_ptr.vmem [resolvable:$true] %s29
      %35 = dma.hbm_to_vmem [thread:$0]  %s28, 2048, %s30, [#allocation4], 128, 128, 8
    $region25: #{tpu_custom_call.1} parent=1 // pred_fallthru
      _
    // Predicated region
    $region26: #{tpu_custom_call.1} parent=1 // pred_check
      _
    $region27: #{tpu_custom_call.1} parent=1 // pred_check_branch
      %37 = sbr.rel (0) target = $region29
    $region28: #{tpu_custom_call.1} parent=1 // pred_region
      %39 = dma.done [#allocation4], 2048
    $region29: #{tpu_custom_call.1} parent=1 // pred_fallthru
      _
    %p40 = scmp.eq.s32.totalorder 0, 0
    // Predicated region
    $region30: #{tpu_custom_call.1} parent=1 // pred_check
      %p41 = pneg %p40
    $region31: #{tpu_custom_call.1} parent=1 // pred_check_branch
      %43 = sbr.rel (%p41) target = $region33
    $region32: #{tpu_custom_call.1} parent=1 // pred_region
      %vm44 = vcmask 7168
      %45 = vst.msk [vmem:[#allocation2] sm:$0xff] %vm44, inf
      %46 = vst.msk [vmem:[#allocation2 + $0x8] sm:$0xff] %vm44, inf
      %47 = vst.msk [vmem:[#allocation2 + $0x10] sm:$0xff] %vm44, inf
      %48 = vst.msk [vmem:[#allocation2 + $0x18] sm:$0xff] %vm44, inf
      %49 = vst.msk [vmem:[#allocation2 + $0x20] sm:$0xff] %vm44, inf
      %50 = vst.msk [vmem:[#allocation2 + $0x28] sm:$0xff] %vm44, inf
      %51 = vst [vmem:[#allocation6] sm:$0xff] 0.0
      %52 = vst [vmem:[#allocation6 + $0x8] sm:$0xff] 0.0
      %53 = vst [vmem:[#allocation6 + $0x10] sm:$0xff] 0.0
      %54 = vst [vmem:[#allocation6 + $0x18] sm:$0xff] 0.0
      %55 = vst [vmem:[#allocation6 + $0x20] sm:$0xff] 0.0
      %56 = vst [vmem:[#allocation6 + $0x28] sm:$0xff] 0.0
    $region33: #{tpu_custom_call.1} parent=1 // pred_fallthru
      _
    %v57 = vld [vmem:[%s4] sm:$0x1]
    %v58 = vld [vmem:[%s0] sm:$0xff]
    %v59 = vld [vmem:[%s0 + $0x8] sm:$0xff]
    %v60 = vld [vmem:[%s0 + $0x10] sm:$0xff]
    %v61 = vld [vmem:[%s0 + $0x18] sm:$0xff]
    %v62 = vld [vmem:[%s0 + $0x20] sm:$0xff]
    %v63 = vld [vmem:[%s0 + $0x28] sm:$0xff]
    %v64 = vld [vmem:[%s1] sm:$0xff]
    %v65 = vld [vmem:[%s1 + $0x8] sm:$0xff]
    %v66 = vld [vmem:[%s1 + $0x10] sm:$0xff]
    %v67 = vld [vmem:[%s1 + $0x18] sm:$0xff]
    %v68 = vld [vmem:[%s1 + $0x20] sm:$0xff]
    %v69 = vld [vmem:[%s1 + $0x28] sm:$0xff]
    %v70 = vld [vmem:[%s2] sm:$0x1]
    %v71 = vld [vmem:[%s3] sm:$0x1]
    %73 = vset.pattern.permute.xlu0 0
    %74 = vperm.xlu0 %73, %v58
    %v75 = vpop.permute.xlu0 %74
    %78 = vset.pattern.permute.xlu0 0
    %79 = vperm.xlu0 %78, %v59
    %v80 = vpop.permute.xlu0 %79
    %83 = vset.pattern.permute.xlu0 0
    %84 = vperm.xlu0 %83, %v60
    %v85 = vpop.permute.xlu0 %84
    %88 = vset.pattern.permute.xlu0 0
    %89 = vperm.xlu0 %88, %v61
    %v90 = vpop.permute.xlu0 %89
    %93 = vset.pattern.permute.xlu0 0
    %94 = vperm.xlu0 %93, %v62
    %v95 = vpop.permute.xlu0 %94
    %98 = vset.pattern.permute.xlu0 0
    %99 = vperm.xlu0 %98, %v63
    %v100 = vpop.permute.xlu0 %99
    %v103 = vperm.slane %v70, 0
    %v105 = vsub.f32 %v75, %v103
    %v106 = vsub.f32 %v80, %v103
    %v107 = vsub.f32 %v85, %v103
    %v108 = vsub.f32 %v90, %v103
    %v109 = vsub.f32 %v95, %v103
    %v110 = vsub.f32 %v100, %v103
    %112 = vset.pattern.permute.xlu0 0
    %113 = vperm.xlu0 %112, %v64
    %v114 = vpop.permute.xlu0 %113
    %117 = vset.pattern.permute.xlu0 0
    %118 = vperm.xlu0 %117, %v65
    %v119 = vpop.permute.xlu0 %118
    %122 = vset.pattern.permute.xlu0 0
    %123 = vperm.xlu0 %122, %v66
    %v124 = vpop.permute.xlu0 %123
    %127 = vset.pattern.permute.xlu0 0
    %128 = vperm.xlu0 %127, %v67
    %v129 = vpop.permute.xlu0 %128
    %132 = vset.pattern.permute.xlu0 0
    %133 = vperm.xlu0 %132, %v68
    %v134 = vpop.permute.xlu0 %133
    %137 = vset.pattern.permute.xlu0 0
    %138 = vperm.xlu0 %137, %v69
    %v139 = vpop.permute.xlu0 %138
    %v142 = vperm.slane %v71, 0
    %v144 = vsub.f32 %v114, %v142
    %v145 = vsub.f32 %v119, %v142
    %v146 = vsub.f32 %v124, %v142
    %v147 = vsub.f32 %v129, %v142
    %v148 = vsub.f32 %v134, %v142
    %v149 = vsub.f32 %v139, %v142
    %v150 = vmul.f32 %v105, %v105
    %v151 = vmul.f32 %v106, %v106
    %v152 = vmul.f32 %v107, %v107
    %v153 = vmul.f32 %v108, %v108
    %v154 = vmul.f32 %v109, %v109
    %v155 = vmul.f32 %v110, %v110
    %v156 = vmul.f32 %v144, %v144
    %v157 = vmul.f32 %v145, %v145
    %v158 = vmul.f32 %v146, %v146
    %v159 = vmul.f32 %v147, %v147
    %v160 = vmul.f32 %v148, %v148
    %v161 = vmul.f32 %v149, %v149
    %v162 = vadd.f32 %v150, %v156
    %v163 = vadd.f32 %v151, %v157
    %v164 = vadd.f32 %v152, %v158
    %v165 = vadd.f32 %v153, %v159
    %v166 = vadd.f32 %v154, %v160
    %v167 = vadd.f32 %v155, %v161
    %168 = vmin.xlane.f32.xlu0 %v162
    %v169 = vpop.xlane.xlu0 %168
    %170 = vmin.xlane.f32.xlu0 %v163
    %v171 = vpop.xlane.xlu0 %170
    %172 = vmin.xlane.f32.xlu0 %v164
    %v173 = vpop.xlane.xlu0 %172
    %174 = vmin.xlane.f32.xlu0 %v165
    %v175 = vpop.xlane.xlu0 %174
    %176 = vmin.xlane.f32.xlu0 %v166
    %v177 = vpop.xlane.xlu0 %176
    %178 = vmin.xlane.f32.xlu0 %v167
    %v179 = vpop.xlane.xlu0 %178
    %vm180 = vcmp.le.f32.partialorder %v162, %v169
    %vm181 = vcmp.le.f32.partialorder %v163, %v171
    %vm182 = vcmp.le.f32.partialorder %v164, %v173
    %vm183 = vcmp.le.f32.partialorder %v165, %v175
    %vm184 = vcmp.le.f32.partialorder %v166, %v177
    %vm185 = vcmp.le.f32.partialorder %v167, %v179
    %v186 = vperm.slane %v57, 0
    %v187 = vsel %vm180, %v186, 128
    %v188 = vsel %vm181, %v186, 128
    %v189 = vsel %vm182, %v186, 128
    %v190 = vsel %vm183, %v186, 128
    %v191 = vsel %vm184, %v186, 128
    %v192 = vsel %vm185, %v186, 128
    %v193 = vand.u32 %v187, 65535
    %v194 = vshra.s32 %v187, 16
    %v195 = vcvt.s32.f32 %v193
    %v196 = vcvt.s32.f32 %v194
    %197 = vmin.xlane.f32.xlu0 %v196
    %v198 = vpop.xlane.xlu0 %197
    %vm199 = vcmp.eq.f32.partialorder %v196, %v198
    %v200 = vsel %vm199, %v195, inf
    %201 = vmin.xlane.f32.xlu0 %v200
    %v202 = vpop.xlane.xlu0 %201
    %v203 = vcvt.f32.s32 %v202
    %v204 = vcvt.f32.s32 %v198
    %v205 = vshll.u32 %v204, 16
    %v206 = vadd.s32 %v205, %v203
    %v207 = vand.u32 %v188, 65535
    %v208 = vshra.s32 %v188, 16
    %v209 = vcvt.s32.f32 %v207
    %v210 = vcvt.s32.f32 %v208
    %211 = vmin.xlane.f32.xlu0 %v210
    %v212 = vpop.xlane.xlu0 %211
    %vm213 = vcmp.eq.f32.partialorder %v210, %v212
    %v214 = vsel %vm213, %v209, inf
    %215 = vmin.xlane.f32.xlu0 %v214
    %v216 = vpop.xlane.xlu0 %215
    %v217 = vcvt.f32.s32 %v216
    %v218 = vcvt.f32.s32 %v212
    %v219 = vshll.u32 %v218, 16
    %v220 = vadd.s32 %v219, %v217
    %v221 = vand.u32 %v189, 65535
    %v222 = vshra.s32 %v189, 16
    %v223 = vcvt.s32.f32 %v221
    %v224 = vcvt.s32.f32 %v222
    %225 = vmin.xlane.f32.xlu0 %v224
    %v226 = vpop.xlane.xlu0 %225
    %vm227 = vcmp.eq.f32.partialorder %v224, %v226
    %v228 = vsel %vm227, %v223, inf
    %229 = vmin.xlane.f32.xlu0 %v228
    %v230 = vpop.xlane.xlu0 %229
    %v231 = vcvt.f32.s32 %v230
    %v232 = vcvt.f32.s32 %v226
    %v233 = vshll.u32 %v232, 16
    %v234 = vadd.s32 %v233, %v231
    %v235 = vand.u32 %v190, 65535
    %v236 = vshra.s32 %v190, 16
    %v237 = vcvt.s32.f32 %v235
    %v238 = vcvt.s32.f32 %v236
    %239 = vmin.xlane.f32.xlu0 %v238
    %v240 = vpop.xlane.xlu0 %239
    %vm241 = vcmp.eq.f32.partialorder %v238, %v240
    %v242 = vsel %vm241, %v237, inf
    %243 = vmin.xlane.f32.xlu0 %v242
    %v244 = vpop.xlane.xlu0 %243
    %v245 = vcvt.f32.s32 %v244
    %v246 = vcvt.f32.s32 %v240
    %v247 = vshll.u32 %v246, 16
    %v248 = vadd.s32 %v247, %v245
    %v249 = vand.u32 %v191, 65535
    %v250 = vshra.s32 %v191, 16
    %v251 = vcvt.s32.f32 %v249
    %v252 = vcvt.s32.f32 %v250
    %253 = vmin.xlane.f32.xlu0 %v252
    %v254 = vpop.xlane.xlu0 %253
    %vm255 = vcmp.eq.f32.partialorder %v252, %v254
    %v256 = vsel %vm255, %v251, inf
    %257 = vmin.xlane.f32.xlu0 %v256
    %v258 = vpop.xlane.xlu0 %257
    %v259 = vcvt.f32.s32 %v258
    %v260 = vcvt.f32.s32 %v254
    %v261 = vshll.u32 %v260, 16
    %v262 = vadd.s32 %v261, %v259
    %v263 = vand.u32 %v192, 65535
    %v264 = vshra.s32 %v192, 16
    %v265 = vcvt.s32.f32 %v263
    %v266 = vcvt.s32.f32 %v264
    %267 = vmin.xlane.f32.xlu0 %v266
    %v268 = vpop.xlane.xlu0 %267
    %vm269 = vcmp.eq.f32.partialorder %v266, %v268
    %v270 = vsel %vm269, %v265, inf
    %271 = vmin.xlane.f32.xlu0 %v270
    %v272 = vpop.xlane.xlu0 %271
    %v273 = vcvt.f32.s32 %v272
    %v274 = vcvt.f32.s32 %v268
    %v275 = vshll.u32 %v274, 16
    %v276 = vadd.s32 %v275, %v273
    %vm277 = vcmp.eq.s32.totalorder %v186, %v206
    %vm278 = vcmp.eq.s32.totalorder %v186, %v220
    %vm279 = vcmp.eq.s32.totalorder %v186, %v234
    %vm280 = vcmp.eq.s32.totalorder %v186, %v248
    %vm281 = vcmp.eq.s32.totalorder %v186, %v262
    %vm282 = vcmp.eq.s32.totalorder %v186, %v276
    %v283 = vsel %vm277, 1, 0
    %v284 = vsel %vm278, 1, 0
    %v285 = vsel %vm279, 1, 0
    %v286 = vsel %vm280, 1, 0
    %v287 = vsel %vm281, 1, 0
    %v288 = vsel %vm282, 1, 0
    %v289 = vcvt.s32.f32 %v283
    %v290 = vcvt.s32.f32 %v284
    %v291 = vcvt.s32.f32 %v285
    %v292 = vcvt.s32.f32 %v286
    %v293 = vcvt.s32.f32 %v287
    %v294 = vcvt.s32.f32 %v288
    %v295 = vld [vmem:[#allocation3] sm:$0xff]
    %v296 = vld [vmem:[#allocation3 + $0x8] sm:$0xff]
    %v297 = vld [vmem:[#allocation3 + $0x10] sm:$0xff]
    %v298 = vld [vmem:[#allocation3 + $0x18] sm:$0xff]
    %v299 = vld [vmem:[#allocation3 + $0x20] sm:$0xff]
    %v300 = vld [vmem:[#allocation3 + $0x28] sm:$0xff]
    %v301 = vld [vmem:[#allocation3 + $0x30] sm:$0xff]
    %v302 = vld [vmem:[#allocation3 + $0x38] sm:$0xff]
    %v303 = vld [vmem:[#allocation3 + $0x40] sm:$0xff]
    %v304 = vld [vmem:[#allocation3 + $0x48] sm:$0xff]
    %v305 = vld [vmem:[#allocation3 + $0x50] sm:$0xff]
    %v306 = vld [vmem:[#allocation3 + $0x58] sm:$0xff]
    %v307 = vld [vmem:[#allocation3 + $0x60] sm:$0xff]
    %v308 = vld [vmem:[#allocation3 + $0x68] sm:$0xff]
    %v309 = vld [vmem:[#allocation3 + $0x70] sm:$0xff]
    %v310 = vld [vmem:[#allocation3 + $0x78] sm:$0xff]
    %311 = vmatpush.msra.mxu0 %v310
    %312 = vmatpush.msra.mxu0 %v309
    %313 = vmatpush.msra.mxu0 %v308
    %314 = vmatpush.msra.mxu0 %v307
    %315 = vmatpush.msra.mxu0 %v306
    %316 = vmatpush.msra.mxu0 %v305
    %317 = vmatpush.msra.mxu0 %v304
    %318 = vmatpush.msra.mxu0 %v303
    %319 = vmatpush.msra.mxu0 %v302
    %320 = vmatpush.msra.mxu0 %v301
    %321 = vmatpush.msra.mxu0 %v300
    %322 = vmatpush.msra.mxu0 %v299
    %323 = vmatpush.msra.mxu0 %v298
    %324 = vmatpush.msra.mxu0 %v297
    %325 = vmatpush.msra.mxu0 %v296
    %326 = vmatpush.msra.mxu0 %v295
    %327 = vmatmul.f32.gmra.mxu0 %v289
    %v328 = vpop.f32.mrf.mxu0
    %v329 = vadd.f32 0.0, %v328
    %330 = vmatmul.f32.gmra.mxu0 %v290
    %v331 = vpop.f32.mrf.mxu0
    %v332 = vadd.f32 0.0, %v331
    %333 = vmatmul.f32.gmra.mxu0 %v291
    %v334 = vpop.f32.mrf.mxu0
    %v335 = vadd.f32 0.0, %v334
    %336 = vmatmul.f32.gmra.mxu0 %v292
    %v337 = vpop.f32.mrf.mxu0
    %v338 = vadd.f32 0.0, %v337
    %339 = vmatmul.f32.gmra.mxu0 %v293
    %v340 = vpop.f32.mrf.mxu0
    %v341 = vadd.f32 0.0, %v340
    %342 = vmatmul.f32.gmra.mxu0 %v294
    %v343 = vpop.f32.mrf.mxu0
    %v344 = vadd.f32 0.0, %v343
    %345 = vdwg.mxu0
    %v346 = vld [vmem:[#allocation2] sm:$0xff]
    %v347 = vld [vmem:[#allocation2 + $0x8] sm:$0xff]
    %v348 = vld [vmem:[#allocation2 + $0x10] sm:$0xff]
    %v349 = vld [vmem:[#allocation2 + $0x18] sm:$0xff]
    %v350 = vld [vmem:[#allocation2 + $0x20] sm:$0xff]
    %v351 = vld [vmem:[#allocation2 + $0x28] sm:$0xff]
    %vm352 = vcmp.lt.f32.partialorder %v169, %v346
    %vm353 = vcmp.lt.f32.partialorder %v171, %v347
    %vm354 = vcmp.lt.f32.partialorder %v173, %v348
    %vm355 = vcmp.lt.f32.partialorder %v175, %v349
    %vm356 = vcmp.lt.f32.partialorder %v177, %v350
    %vm357 = vcmp.lt.f32.partialorder %v179, %v351
    %v358 = vsel %vm352, %v169, %v346
    %v359 = vsel %vm353, %v171, %v347
    %v360 = vsel %vm354, %v173, %v348
    %v361 = vsel %vm355, %v175, %v349
    %v362 = vsel %vm356, %v177, %v350
    %v363 = vsel %vm357, %v179, %v351
    %vm364 = vcmask 7168
    %365 = vst.msk [vmem:[#allocation2] sm:$0xff] %vm364, %v358
    %366 = vst.msk [vmem:[#allocation2 + $0x8] sm:$0xff] %vm364, %v359
    %367 = vst.msk [vmem:[#allocation2 + $0x10] sm:$0xff] %vm364, %v360
    %368 = vst.msk [vmem:[#allocation2 + $0x18] sm:$0xff] %vm364, %v361
    %369 = vst.msk [vmem:[#allocation2 + $0x20] sm:$0xff] %vm364, %v362
    %370 = vst.msk [vmem:[#allocation2 + $0x28] sm:$0xff] %vm364, %v363
    %v371 = vld [vmem:[#allocation6] sm:$0xff]
    %v372 = vld [vmem:[#allocation6 + $0x8] sm:$0xff]
    %v373 = vld [vmem:[#allocation6 + $0x10] sm:$0xff]
    %v374 = vld [vmem:[#allocation6 + $0x18] sm:$0xff]
    %v375 = vld [vmem:[#allocation6 + $0x20] sm:$0xff]
    %v376 = vld [vmem:[#allocation6 + $0x28] sm:$0xff]
    %v377 = vsel %vm352, 1, 0
    %v378 = vsel %vm353, 1, 0
    %v379 = vsel %vm354, 1, 0
    %v380 = vsel %vm355, 1, 0
    %v381 = vsel %vm356, 1, 0
    %v382 = vsel %vm357, 1, 0
    %383 = vset.pattern.permute.xlu0 0
    %384 = vperm.xlu0 %383, %v377
    %v385 = vpop.permute.xlu0 %384
    %386 = vset.pattern.permute.xlu0 0
    %387 = vperm.xlu0 %386, %v378
    %v388 = vpop.permute.xlu0 %387
    %389 = vset.pattern.permute.xlu0 0
    %390 = vperm.xlu0 %389, %v379
    %v391 = vpop.permute.xlu0 %390
    %392 = vset.pattern.permute.xlu0 0
    %393 = vperm.xlu0 %392, %v380
    %v394 = vpop.permute.xlu0 %393
    %395 = vset.pattern.permute.xlu0 0
    %396 = vperm.xlu0 %395, %v381
    %v397 = vpop.permute.xlu0 %396
    %398 = vset.pattern.permute.xlu0 0
    %399 = vperm.xlu0 %398, %v382
    %v400 = vpop.permute.xlu0 %399
    %vm401 = vcmp.eq.s32.totalorder %v385, 1
    %vm402 = vcmp.eq.s32.totalorder %v388, 1
    %vm403 = vcmp.eq.s32.totalorder %v391, 1
    %vm404 = vcmp.eq.s32.totalorder %v394, 1
    %vm405 = vcmp.eq.s32.totalorder %v397, 1
    %vm406 = vcmp.eq.s32.totalorder %v400, 1
    %v407 = vsel %vm401, %v329, %v371
    %v408 = vsel %vm402, %v332, %v372
    %v409 = vsel %vm403, %v335, %v373
    %v410 = vsel %vm404, %v338, %v374
    %v411 = vsel %vm405, %v341, %v375
    %v412 = vsel %vm406, %v344, %v376
    %413 = vst [vmem:[#allocation6] sm:$0xff] %v407
    %414 = vst [vmem:[#allocation6 + $0x8] sm:$0xff] %v408
    %415 = vst [vmem:[#allocation6 + $0x10] sm:$0xff] %v409
    %416 = vst [vmem:[#allocation6 + $0x18] sm:$0xff] %v410
    %417 = vst [vmem:[#allocation6 + $0x20] sm:$0xff] %v411
    %418 = vst [vmem:[#allocation6 + $0x28] sm:$0xff] %v412
    // Predicated region
    $region34: #{tpu_custom_call.1} parent=1 // pred_check
      _
    $region35: #{tpu_custom_call.1} parent=1 // pred_check_branch
      %420 = sbr.rel (0) target = $region37
    $region36: #{tpu_custom_call.1} parent=1 // pred_region
      %422 = vsyncadd [#allocation5], 0
      %s423 = sshll.u32 [#allocation6], 4
      %s424 = int_to_ptr.vmem [resolvable:$true] %s423
      %s425 = sshll.u32 %s6, 4
      %s426 = int_to_ptr.hbm [resolvable:$true] %s425
      %431 = dma.vmem_to_hbm [thread:$0]  %s424, 768, %s426, [#allocation5], 128, 128, 8
    $region37: #{tpu_custom_call.1} parent=1 // pred_fallthru
      _
    // Predicated region
    $region38: #{tpu_custom_call.1} parent=1 // pred_check
      _
    $region39: #{tpu_custom_call.1} parent=1 // pred_check_branch
      %433 = sbr.rel (0) target = $region41
    $region40: #{tpu_custom_call.1} parent=1 // pred_region
      %435 = dma.done [#allocation5], 768
    $region41: #{tpu_custom_call.1} parent=1 // pred_fallthru
      _
    %436 = vsyncpa [#allocation4], 1
    %437 = vsyncpa [#allocation5], 1

</llo_original>
